<compile_context>
chip_gen: v6e
topology: v6e:2x2x1
jax: 0.10.0
libtpu: 0.0.40
codegen_flags: <defaults>
</compile_context>

<pallas_src>
import functools

import jax
import jax.numpy as jnp
from jax import lax
from jax.experimental import pallas as pl
from jax.experimental.pallas import tpu as pltpu


def _round_up(x, m):
    return (x + m - 1) // m * m


# ----------------------------------------------------------------------------
# Pallas kernels:  out = relu(P @ W_folded + bias [+ residual])
#   P:[tile_m,K]  W:[K,Cout_pad]  bias:[1,Cout_pad]  res:[tile_m,Cout_pad]
# ----------------------------------------------------------------------------
def _mm_bias_relu_kernel(p_ref, w_ref, b_ref, o_ref):
    acc = jnp.dot(p_ref[...], w_ref[...], preferred_element_type=jnp.float32)
    o_ref[...] = jnp.maximum(acc + b_ref[...], 0.0).astype(o_ref.dtype)


def _mm_bias_res_relu_kernel(p_ref, w_ref, b_ref, r_ref, o_ref):
    acc = jnp.dot(p_ref[...], w_ref[...], preferred_element_type=jnp.float32)
    out = acc + b_ref[...] + r_ref[...].astype(jnp.float32)
    o_ref[...] = jnp.maximum(out, 0.0).astype(o_ref.dtype)


def fused_conv_bn_relu(patches, w_folded, bias, residual=None, *,
                       tile_m=512, compute_dtype=jnp.float32,
                       out_dtype=jnp.float32):
    """relu(patches @ w_folded + bias [+ residual]) with an M-tiled grid.

    patches:  [M, K]        im2col rows
    w_folded: [K, Cout]     BN scale already folded into the weights
    bias:     [Cout]
    residual: [M, Cout] or None
    """
    M, K = patches.shape
    Cout = w_folded.shape[1]

    # Lane-dense output channels (multiple of 128), sublane-aligned M tiles.
    cp = _round_up(Cout, 128)
    tile_m = _round_up(max(8, min(tile_m, _round_up(M, 8))), 8)
    mp = _round_up(M, tile_m)
    grid_m = mp // tile_m

    p = jnp.pad(patches, ((0, mp - M), (0, 0))).astype(compute_dtype)
    wp = jnp.pad(w_folded, ((0, 0), (0, cp - Cout))).astype(compute_dtype)
    bp = jnp.pad(bias.reshape(1, -1),
                 ((0, 0), (0, cp - Cout))).astype(jnp.float32)

    operands = [p, wp, bp]
    in_specs = [
        pl.BlockSpec((tile_m, K), lambda i: (i, 0)),   # K = full array dim
        pl.BlockSpec((K, cp), lambda i: (0, 0)),
        pl.BlockSpec((1, cp), lambda i: (0, 0)),
    ]
    if residual is not None:
        rp = jnp.pad(residual,
                     ((0, mp - M), (0, cp - Cout))).astype(compute_dtype)
        operands.append(rp)
        in_specs.append(pl.BlockSpec((tile_m, cp), lambda i: (i, 0)))
        kernel = _mm_bias_res_relu_kernel
    else:
        kernel = _mm_bias_relu_kernel

    # VMEM budget: per-tile operands + output, x2 for double buffering, plus
    # headroom; capped at the v7x 64 MiB physical VMEM.
    isz = jnp.dtype(compute_dtype).itemsize
    per_step = (tile_m * K + K * cp) * isz + cp * 4
    per_step += tile_m * cp * jnp.dtype(out_dtype).itemsize
    if residual is not None:
        per_step += tile_m * cp * isz
    vmem_limit = int(min(64 << 20, 2 * per_step + (8 << 20)))

    out = pl.pallas_call(
        kernel,
        out_shape=jax.ShapeDtypeStruct((mp, cp), out_dtype),
        grid=(grid_m,),
        in_specs=in_specs,
        out_specs=pl.BlockSpec((tile_m, cp), lambda i: (i, 0)),
        compiler_params=pltpu.CompilerParams(
            dimension_semantics=("parallel",),
            vmem_limit_bytes=vmem_limit),
    )(*operands)
    return out[:M, :Cout]


# ----------------------------------------------------------------------------
# JAX glue: im2col, weight reshaping, BN folding, option-A shortcut.
# ----------------------------------------------------------------------------
def im2col(x_nhwc, stride, ksize=3, pad=1):
    N, H, W, C = x_nhwc.shape
    xp = jnp.pad(x_nhwc, ((0, 0), (pad, pad), (pad, pad), (0, 0)))
    Ho = (H + 2 * pad - ksize) // stride + 1
    Wo = (W + 2 * pad - ksize) // stride + 1
    cols = []
    for kh in range(ksize):
        for kw in range(ksize):
            cols.append(
                xp[:, kh:kh + Ho * stride:stride, kw:kw + Wo * stride:stride, :]
            )
    patches = jnp.concatenate(cols, axis=-1)            # [N, Ho, Wo, 9*C]
    return patches.reshape(N * Ho * Wo, ksize * ksize * C), Ho, Wo


def conv_weight_to_matrix(w_oihw):
    # PyTorch conv weight [Cout, Cin, kh, kw] -> [kh*kw*Cin, Cout],
    # matching im2col ordering ((kh, kw) major, Cin minor).
    Cout, Cin, kh, kw = w_oihw.shape
    return jnp.transpose(w_oihw, (2, 3, 1, 0)).reshape(kh * kw * Cin, Cout)


def fold_bn_into_weight(w_mat, gamma, beta, mean, var, eps=1e-5):
    # bn(conv(x, W)) == conv(x, W * scale) + (beta - mean * scale)
    scale = gamma / jnp.sqrt(var + eps)                 # [Cout]
    return w_mat * scale[None, :], beta - mean * scale


def basic_block_forward(x_nchw, params, *, stride, in_planes, resnet_planes,
                        tile_m=512, compute_dtype=jnp.float32):
    N, Cin, H, W = x_nchw.shape
    x = jnp.transpose(x_nchw, (0, 2, 3, 1))             # NHWC

    # --- conv1 + bn1 + relu (no residual stream) -----------------------------
    p1, Ho, Wo = im2col(x, stride=stride)
    w1, b1 = fold_bn_into_weight(conv_weight_to_matrix(params["w1"]),
                                 params["gamma1"], params["beta1"],
                                 params["mean1"], params["var1"])
    out1 = fused_conv_bn_relu(p1, w1, b1, None, tile_m=tile_m,
                              compute_dtype=compute_dtype)
    mid = w1.shape[1]
    out1_nhwc = out1.reshape(N, Ho, Wo, mid)

    # TODO(synk): DropNPrune undefined in source; identity (eval) here.

    # --- conv2 + bn2 + shortcut + relu ---------------------------------------
    p2, Ho2, Wo2 = im2col(out1_nhwc, stride=1)
    w2, b2 = fold_bn_into_weight(conv_weight_to_matrix(params["w2"]),
                                 params["gamma2"], params["beta2"],
                                 params["mean2"], params["var2"])

    if stride != 1 or in_planes != resnet_planes:
        # option 'A' shortcut: ::2 spatial subsample + symmetric channel 0-pad.
        sc = x[:, ::2, ::2, :]
        padc = resnet_planes // 4
        sc = jnp.pad(sc, ((0, 0), (0, 0), (0, 0), (padc, padc)))
    else:
        sc = x
    res = sc.reshape(N * Ho2 * Wo2, -1).astype(jnp.float32)

    out2 = fused_conv_bn_relu(p2, w2, b2, res, tile_m=tile_m,
                              compute_dtype=compute_dtype)
    out2 = out2.reshape(N, Ho2, Wo2, -1)
    return jnp.transpose(out2, (0, 3, 1, 2))             # back to NCHW


# ----------------------------------------------------------------------------
# Pure-JAX reference (for correctness check only).
# ----------------------------------------------------------------------------
def reference_forward(x, params, *, stride, in_planes, resnet_planes, eps=1e-5):
    def conv(xx, w, s):
        return lax.conv_general_dilated(
            xx, w, (s, s), [(1, 1), (1, 1)],
            dimension_numbers=("NCHW", "OIHW", "NCHW"))

    def bn(xx, g, b, m, v):
        sc = g / jnp.sqrt(v + eps)
        return xx * sc[None, :, None, None] + (b - m * sc)[None, :, None, None]

    out = jnp.maximum(bn(conv(x, params["w1"], stride),
                         params["gamma1"], params["beta1"],
                         params["mean1"], params["var1"]), 0.0)
    out = bn(conv(out, params["w2"], 1),
             params["gamma2"], params["beta2"],
             params["mean2"], params["var2"])
    if stride != 1 or in_planes != resnet_planes:
        sc = x[:, :, ::2, ::2]
        padc = resnet_planes // 4
        sc = jnp.pad(sc, ((0, 0), (padc, padc), (0, 0), (0, 0)))
    else:
        sc = x
    return jnp.maximum(out + sc, 0.0)


# ----------------------------------------------------------------------------
if __name__ == "__main__":
    # BasicBlock(in_planes=4, mid_planes=8, out_planes=8, resnet_planes=8,
    #            stride=2, option='A')
    in_planes, mid_planes, out_planes, resnet_planes, stride = 4, 8, 8, 8, 2
    N, H, W = 2, 16, 16

    key = jax.random.PRNGKey(0)
    ks = jax.random.split(key, 12)
    params = {
        "w1": 0.1 * jax.random.normal(ks[0], (mid_planes, in_planes, 3, 3), jnp.float32),
        "gamma1": 1.0 + 0.1 * jax.random.normal(ks[1], (mid_planes,), jnp.float32),
        "beta1": 0.1 * jax.random.normal(ks[2], (mid_planes,), jnp.float32),
        "mean1": 0.1 * jax.random.normal(ks[3], (mid_planes,), jnp.float32),
        "var1": 0.5 + jax.random.uniform(ks[4], (mid_planes,), jnp.float32),
        "w2": 0.1 * jax.random.normal(ks[5], (out_planes, mid_planes, 3, 3), jnp.float32),
        "gamma2": 1.0 + 0.1 * jax.random.normal(ks[6], (out_planes,), jnp.float32),
        "beta2": 0.1 * jax.random.normal(ks[7], (out_planes,), jnp.float32),
        "mean2": 0.1 * jax.random.normal(ks[8], (out_planes,), jnp.float32),
        "var2": 0.5 + jax.random.uniform(ks[9], (out_planes,), jnp.float32),
    }
    x = jax.random.normal(ks[10], (N, in_planes, H, W), jnp.float32)

    ref = reference_forward(x, params, stride=stride,
                            in_planes=in_planes, resnet_planes=resnet_planes)

    # f32 run (tile_m=64 so the tiny M=128 still exercises a 2-step grid;
    # production would use tile_m in the 512-1024 range).
    fwd = functools.partial(basic_block_forward, stride=stride,
                            in_planes=in_planes, resnet_planes=resnet_planes,
                            tile_m=64, compute_dtype=jnp.float32)
    out = jax.block_until_ready(jax.jit(fwd)(x, params))
    assert out.shape == (N, out_planes, H // stride, W // stride), out.shape
    assert jnp.allclose(out, ref, rtol=1e-4, atol=1e-4), \
        float(jnp.max(jnp.abs(out - ref)))

    # bf16-operand run (f32 MXU accumulation) — recommended on v6e/v7x.
    fwd_bf16 = functools.partial(basic_block_forward, stride=stride,
                                 in_planes=in_planes,
                                 resnet_planes=resnet_planes,
                                 tile_m=64, compute_dtype=jnp.bfloat16)
    out_bf16 = jax.block_until_ready(jax.jit(fwd_bf16)(x, params))
    assert jnp.allclose(out_bf16, ref, rtol=1e-1, atol=1e-1), \
        float(jnp.max(jnp.abs(out_bf16 - ref)))

    print("KERNEL_OK")
</pallas_src>

<mosaic_0001>
module attributes {stable_mosaic.version = 11 : i64} {
  func.func @_mm_bias_relu_kernel(%arg0: i32, %arg1: memref<64x36xf32, #tpu.memory_space<vmem>>, %arg2: memref<36x128xf32, #tpu.memory_space<vmem>>, %arg3: memref<1x128xf32, #tpu.memory_space<vmem>>, %arg4: memref<64x128xf32, #tpu.memory_space<vmem>>) attributes {dimension_semantics = [#tpu.dimension_semantics<parallel>], iteration_bounds = array<i64: 2>, scalar_prefetch = 0 : i64, scratch_operands = 0 : i64, tpu.core_type = #tpu.core_type<tc>, window_params = [{transform_indices = @transform_0, window_bounds = array<i64: 64, 36>}, {pipeline_mode = #tpu.pipeline_mode<synchronous>, transform_indices = @transform_1, window_bounds = array<i64: 36, 128>}, {pipeline_mode = #tpu.pipeline_mode<synchronous>, transform_indices = @transform_2, window_bounds = array<i64: 1, 128>}, {transform_indices = @transform_3, window_bounds = array<i64: 64, 128>}]} {
    %c0 = arith.constant 0 : index
    %c0_0 = arith.constant 0 : index
    %0 = vector.load %arg1[%c0, %c0_0] : memref<64x36xf32, #tpu.memory_space<vmem>>, vector<64x36xf32>
    %c0_1 = arith.constant 0 : index
    %c0_2 = arith.constant 0 : index
    %1 = vector.load %arg2[%c0_1, %c0_2] : memref<36x128xf32, #tpu.memory_space<vmem>>, vector<36x128xf32>
    %cst = arith.constant dense<0.000000e+00> : vector<64x128xf32>
    %2 = tpu.matmul %0, %1, %cst {dimension_numbers = #tpu.dot_dimension_numbers<[1], [0], [0], [1], [0, 0, 1, 1], [], []>} : vector<64x36xf32>, vector<36x128xf32>, vector<64x128xf32> -> vector<64x128xf32>
    %c0_3 = arith.constant 0 : index
    %c0_4 = arith.constant 0 : index
    %3 = vector.load %arg3[%c0_3, %c0_4] : memref<1x128xf32, #tpu.memory_space<vmem>>, vector<1x128xf32>
    %4 = vector.broadcast %3 : vector<1x128xf32> to vector<64x128xf32>
    %5 = arith.addf %2, %4 : vector<64x128xf32>
    %cst_5 = arith.constant 0.000000e+00 : f32
    %6 = vector.broadcast %cst_5 : f32 to vector<64x128xf32>
    %7 = arith.maximumf %5, %6 : vector<64x128xf32>
    %c0_6 = arith.constant 0 : index
    %c0_7 = arith.constant 0 : index
    %8 = vector.load %arg4[%c0_6, %c0_7] : memref<64x128xf32, #tpu.memory_space<vmem>>, vector<64x128xf32>
    tpu.vector_store %arg4[%c0_6, %c0_7], %7 {strides = array<i32>} : memref<64x128xf32, #tpu.memory_space<vmem>>, vector<64x128xf32>,
    return
  }
  func.func @transform_0(%arg0: i32) -> (i32, i32) {
    %c0_i32 = arith.constant 0 : i32
    %c0_i32_0 = arith.constant 0 : i32
    return %arg0, %c0_i32 : i32, i32
  }
  func.func @transform_1(%arg0: i32) -> (i32, i32) {
    %c0_i32 = arith.constant 0 : i32
    %c0_i32_0 = arith.constant 0 : i32
    %c0_i32_1 = arith.constant 0 : i32
    return %c0_i32, %c0_i32_0 : i32, i32
  }
  func.func @transform_2(%arg0: i32) -> (i32, i32) {
    %c0_i32 = arith.constant 0 : i32
    %c0_i32_0 = arith.constant 0 : i32
    %c0_i32_1 = arith.constant 0 : i32
    return %c0_i32, %c0_i32_0 : i32, i32
  }
  func.func @transform_3(%arg0: i32) -> (i32, i32) {
    %c0_i32 = arith.constant 0 : i32
    %c0_i32_0 = arith.constant 0 : i32
    return %arg0, %c0_i32 : i32, i32
  }
}

module attributes {stable_mosaic.version = 11 : i64} {
  func.func @_mm_bias_res_relu_kernel(%arg0: i32, %arg1: memref<64x72xf32, #tpu.memory_space<vmem>>, %arg2: memref<72x128xf32, #tpu.memory_space<vmem>>, %arg3: memref<1x128xf32, #tpu.memory_space<vmem>>, %arg4: memref<64x128xf32, #tpu.memory_space<vmem>>, %arg5: memref<64x128xf32, #tpu.memory_space<vmem>>) attributes {dimension_semantics = [#tpu.dimension_semantics<parallel>], iteration_bounds = array<i64: 2>, scalar_prefetch = 0 : i64, scratch_operands = 0 : i64, tpu.core_type = #tpu.core_type<tc>, window_params = [{transform_indices = @transform_0, window_bounds = array<i64: 64, 72>}, {pipeline_mode = #tpu.pipeline_mode<synchronous>, transform_indices = @transform_1, window_bounds = array<i64: 72, 128>}, {pipeline_mode = #tpu.pipeline_mode<synchronous>, transform_indices = @transform_2, window_bounds = array<i64: 1, 128>}, {transform_indices = @transform_3, window_bounds = array<i64: 64, 128>}, {transform_indices = @transform_4, window_bounds = array<i64: 64, 128>}]} {
    %c0 = arith.constant 0 : index
    %c0_0 = arith.constant 0 : index
    %0 = vector.load %arg1[%c0, %c0_0] : memref<64x72xf32, #tpu.memory_space<vmem>>, vector<64x72xf32>
    %c0_1 = arith.constant 0 : index
    %c0_2 = arith.constant 0 : index
    %1 = vector.load %arg2[%c0_1, %c0_2] : memref<72x128xf32, #tpu.memory_space<vmem>>, vector<72x128xf32>
    %cst = arith.constant dense<0.000000e+00> : vector<64x128xf32>
    %2 = tpu.matmul %0, %1, %cst {dimension_numbers = #tpu.dot_dimension_numbers<[1], [0], [0], [1], [0, 0, 1, 1], [], []>} : vector<64x72xf32>, vector<72x128xf32>, vector<64x128xf32> -> vector<64x128xf32>
    %c0_3 = arith.constant 0 : index
    %c0_4 = arith.constant 0 : index
    %3 = vector.load %arg3[%c0_3, %c0_4] : memref<1x128xf32, #tpu.memory_space<vmem>>, vector<1x128xf32>
    %4 = vector.broadcast %3 : vector<1x128xf32> to vector<64x128xf32>
    %5 = arith.addf %2, %4 : vector<64x128xf32>
    %c0_5 = arith.constant 0 : index
    %c0_6 = arith.constant 0 : index
    %6 = vector.load %arg4[%c0_5, %c0_6] : memref<64x128xf32, #tpu.memory_space<vmem>>, vector<64x128xf32>
    %7 = arith.addf %5, %6 : vector<64x128xf32>
    %cst_7 = arith.constant 0.000000e+00 : f32
    %8 = vector.broadcast %cst_7 : f32 to vector<64x128xf32>
    %9 = arith.maximumf %7, %8 : vector<64x128xf32>
    %c0_8 = arith.constant 0 : index
    %c0_9 = arith.constant 0 : index
    %10 = vector.load %arg5[%c0_8, %c0_9] : memref<64x128xf32, #tpu.memory_space<vmem>>, vector<64x128xf32>
    tpu.vector_store %arg5[%c0_8, %c0_9], %9 {strides = array<i32>} : memref<64x128xf32, #tpu.memory_space<vmem>>, vector<64x128xf32>,
    return
  }
  func.func @transform_0(%arg0: i32) -> (i32, i32) {
    %c0_i32 = arith.constant 0 : i32
    %c0_i32_0 = arith.constant 0 : i32
    return %arg0, %c0_i32 : i32, i32
  }
  func.func @transform_1(%arg0: i32) -> (i32, i32) {
    %c0_i32 = arith.constant 0 : i32
    %c0_i32_0 = arith.constant 0 : i32
    %c0_i32_1 = arith.constant 0 : i32
    return %c0_i32, %c0_i32_0 : i32, i32
  }
  func.func @transform_2(%arg0: i32) -> (i32, i32) {
    %c0_i32 = arith.constant 0 : i32
    %c0_i32_0 = arith.constant 0 : i32
    %c0_i32_1 = arith.constant 0 : i32
    return %c0_i32, %c0_i32_0 : i32, i32
  }
  func.func @transform_3(%arg0: i32) -> (i32, i32) {
    %c0_i32 = arith.constant 0 : i32
    %c0_i32_0 = arith.constant 0 : i32
    return %arg0, %c0_i32 : i32, i32
  }
  func.func @transform_4(%arg0: i32) -> (i32, i32) {
    %c0_i32 = arith.constant 0 : i32
    %c0_i32_0 = arith.constant 0 : i32
    return %arg0, %c0_i32 : i32, i32
  }
}

</mosaic_0001>

<llo_original>
// kernel: basic_block_forward.3
$region0: #{basic_block_forward.3}
  #allocation0 [shape = 'u32[]', space=smem, size = 0x4, offset = 0x4, fixed_abs, tag = 'smem constant byte address 0x4 - core index']
  #allocation1 [shape = 'u32[144,128]{1,0:T(1,128)}', space=vmem, size = 0x12000, scoped, tag = 'internal scratch']
  %s0 = inlined_call_operand.vmem [shape: f32[128,72], index: 0, kind: input, shape index: {}]
  %s1 = inlined_call_operand.vmem [shape: f32[72,128], index: 1, kind: input, shape index: {}]
  %s2 = inlined_call_operand.vmem [shape: f32[1,128], index: 2, kind: input, shape index: {}]
  %s3 = inlined_call_operand.vmem [shape: f32[128,128], index: 3, kind: input, shape index: {}]
  %s4 = inlined_call_operand.vmem [shape: f32[128,128], index: 4, kind: output, shape index: {}]
  %s5 = sld [smem:[#allocation0]]
  $region49: #{basic_block_forward.3} parent=0
    _
  %s7 = ssub.s32 1, %s5
  %s8 = scalar_select 0, %s7, %s5
  loop: start=0, step=1, limit=4
  $region2: #{basic_block_forward.3} parent=0 // loop_pre_header
    _
  $region3: #{basic_block_forward.3} parent=0 // loop_header
    %s10 = sphi 0, %s14
    %p11 = scmp.ge.s32.totalorder %s10, 4
    %s20 = sphi 0, %s22
    %s23 = sphi 0, %s20
    %s24 = sphi 0, %s23
    %s40 = sphi 0, %s24
    %s44 = sphi 0, %s44
    %s46 = sphi 0, %s44
    %s47 = sphi 0, %s46
    %s61 = sphi 0, %s47
    %s65 = sphi 0, %s65
    %s67 = sphi 0, %s65
    %s68 = sphi 0, %s67
    %s82 = sphi 0, %s68
    %s88 = sphi 0, %s90
    %s91 = sphi 0, %s88
    %s92 = sphi 0, %s91
    %s108 = sphi 0, %s92
    %s114 = sphi 0, %s116
    %s117 = sphi 0, %s114
    %s118 = sphi 0, %s117
    %s134 = sphi 0, %s118
  $region4: #{basic_block_forward.3} parent=0 // loop_header_branch
    %13 = sbr.rel (%p11) target = $region8
  $region5: #{basic_block_forward.3} parent=0 // loop_body
    %s15 = ssub.s32 %s10, 1
    %s16 = ssub.s32 %s10, 2
    %s17 = sadd.s32 %s10, 1
    %s18 = ssub.s32 %s10, %s17
    %p19 = scmp.eq.s32.totalorder %s18, 0
    %s21 = sadd.s32 %s20, 1
    %s22 = scalar_select %p19, %s20, %s21
    %p25 = pneg %p19
    %p26 = scmp.eq.s32.totalorder %s10, 1
    %p27 = por %p25, %p26
    %p28 = scmp.ne.s32.totalorder %s20, %s23
    %p29 = scmp.eq.s32.totalorder %s10, 0
    %p30 = por %p28, %p29
    %p31 = scmp.ne.s32.totalorder %s20, %s23
    %p32 = scmp.eq.s32.totalorder %s15, 1
    %p33 = por %p31, %p32
    %p34 = scmp.ne.s32.totalorder %s23, %s24
    %p35 = scmp.eq.s32.totalorder %s15, 0
    %p36 = por %p34, %p35
    %p37 = scmp.ne.s32.totalorder %s23, %s24
    %p38 = scmp.eq.s32.totalorder %s16, 1
    %p39 = por %p37, %p38
    %p41 = scmp.ne.s32.totalorder %s24, %s40
    %p42 = scmp.eq.s32.totalorder %s16, 0
    %p43 = por %p41, %p42
    %s45 = sadd.s32 %s44, 1
    %p48 = scmp.eq.s32.totalorder %s10, 1
    %p49 = scmp.ne.s32.totalorder %s44, %s46
    %p50 = scmp.eq.s32.totalorder %s10, 0
    %p51 = por %p49, %p50
    %p52 = scmp.ne.s32.totalorder %s44, %s46
    %p53 = scmp.eq.s32.totalorder %s15, 1
    %p54 = por %p52, %p53
    %p55 = scmp.ne.s32.totalorder %s46, %s47
    %p56 = scmp.eq.s32.totalorder %s15, 0
    %p57 = por %p55, %p56
    %p58 = scmp.ne.s32.totalorder %s46, %s47
    %p59 = scmp.eq.s32.totalorder %s16, 1
    %p60 = por %p58, %p59
    %p62 = scmp.ne.s32.totalorder %s47, %s61
    %p63 = scmp.eq.s32.totalorder %s16, 0
    %p64 = por %p62, %p63
    %s66 = sadd.s32 %s65, 1
    %p69 = scmp.eq.s32.totalorder %s10, 1
    %p70 = scmp.ne.s32.totalorder %s65, %s67
    %p71 = scmp.eq.s32.totalorder %s10, 0
    %p72 = por %p70, %p71
    %p73 = scmp.ne.s32.totalorder %s65, %s67
    %p74 = scmp.eq.s32.totalorder %s15, 1
    %p75 = por %p73, %p74
    %p76 = scmp.ne.s32.totalorder %s67, %s68
    %p77 = scmp.eq.s32.totalorder %s15, 0
    %p78 = por %p76, %p77
    %p79 = scmp.ne.s32.totalorder %s67, %s68
    %p80 = scmp.eq.s32.totalorder %s16, 1
    %p81 = por %p79, %p80
    %p83 = scmp.ne.s32.totalorder %s68, %s82
    %p84 = scmp.eq.s32.totalorder %s16, 0
    %p85 = por %p83, %p84
    %s86 = ssub.s32 %s10, %s17
    %p87 = scmp.eq.s32.totalorder %s86, 0
    %s89 = sadd.s32 %s88, 1
    %s90 = scalar_select %p87, %s88, %s89
    %p93 = pneg %p87
    %p94 = scmp.eq.s32.totalorder %s10, 1
    %p95 = por %p93, %p94
    %p96 = scmp.ne.s32.totalorder %s88, %s91
    %p97 = scmp.eq.s32.totalorder %s10, 0
    %p98 = por %p96, %p97
    %p99 = scmp.ne.s32.totalorder %s88, %s91
    %p100 = scmp.eq.s32.totalorder %s15, 1
    %p101 = por %p99, %p100
    %p102 = scmp.ne.s32.totalorder %s91, %s92
    %p103 = scmp.eq.s32.totalorder %s15, 0
    %p104 = por %p102, %p103
    %p105 = scmp.ne.s32.totalorder %s91, %s92
    %p106 = scmp.eq.s32.totalorder %s16, 1
    %p107 = por %p105, %p106
    %p109 = scmp.ne.s32.totalorder %s92, %s108
    %p110 = scmp.eq.s32.totalorder %s16, 0
    %p111 = por %p109, %p110
    %s112 = ssub.s32 %s10, %s17
    %p113 = scmp.eq.s32.totalorder %s112, 0
    %s115 = sadd.s32 %s114, 1
    %s116 = scalar_select %p113, %s114, %s115
    %p119 = pneg %p113
    %p120 = scmp.eq.s32.totalorder %s10, 1
    %p121 = por %p119, %p120
    %p122 = scmp.ne.s32.totalorder %s114, %s117
    %p123 = scmp.eq.s32.totalorder %s10, 0
    %p124 = por %p122, %p123
    %p125 = scmp.ne.s32.totalorder %s114, %s117
    %p126 = scmp.eq.s32.totalorder %s15, 1
    %p127 = por %p125, %p126
    %p128 = scmp.ne.s32.totalorder %s117, %s118
    %p129 = scmp.eq.s32.totalorder %s15, 0
    %p130 = por %p128, %p129
    %p131 = scmp.ne.s32.totalorder %s117, %s118
    %p132 = scmp.eq.s32.totalorder %s16, 1
    %p133 = por %p131, %p132
    %p135 = scmp.ne.s32.totalorder %s118, %s134
    %p136 = scmp.eq.s32.totalorder %s16, 0
    %p137 = por %p135, %p136
    %p138 = scmp.le.s32.totalorder 1, %s10
    %p139 = scmp.lt.s32.totalorder %s10, 3
    %p140 = pnand %p138, %p139
    %p141 = pneg %p140
    // Predicated region
    $region9: #{basic_block_forward.3} parent=5 // pred_check
      _
    $region10: #{basic_block_forward.3} parent=5 // pred_check_branch
      %143 = sbr.rel (%p140) target = $region12
    $region11: #{basic_block_forward.3} parent=5 // pred_region
      %s144 = ssub.s32 %s10, 1
      // Predicated region
      $region13: #{basic_block_forward.3} parent=11 // pred_check
        %p145 = pneg %p57
      $region14: #{basic_block_forward.3} parent=11 // pred_check_branch
        %147 = sbr.rel (%p145) target = $region16
      $region15: #{basic_block_forward.3} parent=11 // pred_region
        _
      $region16: #{basic_block_forward.3} parent=11 // pred_fallthru
        _
      // Predicated region
      $region17: #{basic_block_forward.3} parent=11 // pred_check
        %p148 = pneg %p78
      $region18: #{basic_block_forward.3} parent=11 // pred_check_branch
        %150 = sbr.rel (%p148) target = $region20
      $region19: #{basic_block_forward.3} parent=11 // pred_region
        _
      $region20: #{basic_block_forward.3} parent=11 // pred_fallthru
        _
    $region12: #{basic_block_forward.3} parent=5 // pred_fallthru
      _
    %p151 = scmp.lt.s32.totalorder %s10, 2
    // Predicated region
    $region21: #{basic_block_forward.3} parent=5 // pred_check
      %p152 = pneg %p151
    $region22: #{basic_block_forward.3} parent=5 // pred_check_branch
      %154 = sbr.rel (%p152) target = $region24
    $region23: #{basic_block_forward.3} parent=5 // pred_region
      // Predicated region
      $region25: #{basic_block_forward.3} parent=23 // pred_check
        %p155 = pneg %p30
      $region26: #{basic_block_forward.3} parent=23 // pred_check_branch
        %157 = sbr.rel (%p155) target = $region28
      $region27: #{basic_block_forward.3} parent=23 // pred_region
        %s158 = smul.u32 8, %s10
        %p159 = scmp.lt.s32.totalorder %s158, 15
        %s160 = scalar_select %p159, %s158, 15
        %s161 = smul.addr %s160, 8
        %s162 = scalar_lea.vmem %s0, %s161
        %s163 = smul.u32 8, %s10
      $region28: #{basic_block_forward.3} parent=23 // pred_fallthru
        _
      // Predicated region
      $region29: #{basic_block_forward.3} parent=23 // pred_check
        %p164 = pneg %p98
      $region30: #{basic_block_forward.3} parent=23 // pred_check_branch
        %166 = sbr.rel (%p164) target = $region32
      $region31: #{basic_block_forward.3} parent=23 // pred_region
        %s167 = smul.u32 8, %s10
        %p168 = scmp.lt.s32.totalorder %s167, 15
        %s169 = scalar_select %p168, %s167, 15
        %s170 = smul.addr %s169, 8
        %s171 = scalar_lea.vmem %s3, %s170
        %s172 = smul.u32 8, %s10
      $region32: #{basic_block_forward.3} parent=23 // pred_fallthru
        _
    $region24: #{basic_block_forward.3} parent=5 // pred_fallthru
      _
    %p173 = scmp.le.s32.totalorder 1, %s10
    %p174 = scmp.lt.s32.totalorder %s10, 3
    %p175 = pnand %p173, %p174
    %p176 = pneg %p175
    // Predicated region
    $region33: #{basic_block_forward.3} parent=5 // pred_check
      _
    $region34: #{basic_block_forward.3} parent=5 // pred_check_branch
      %178 = sbr.rel (%p175) target = $region36
    $region35: #{basic_block_forward.3} parent=5 // pred_region
      %s179 = ssub.s32 %s10, 1
      %s180 = smul.u32 8, %s15
      %p181 = scmp.lt.s32.totalorder %s180, 15
      %s182 = scalar_select %p181, %s180, 15
      %s183 = smul.addr %s182, 8
      %s184 = scalar_lea.vmem %s0, %s183
      %p185 = pneg %p36
      %p186 = pneg %p33
      %p187 = pneg %p57
      %p188 = pneg %p54
      %p189 = pneg %p78
      %p190 = pneg %p75
      %s191 = smul.u32 8, %s15
      %p192 = scmp.lt.s32.totalorder %s191, 15
      %s193 = scalar_select %p192, %s191, 15
      %s194 = smul.addr %s193, 8
      %s195 = scalar_lea.vmem %s3, %s194
      %p196 = pneg %p104
      %p197 = pneg %p101
      %p198 = pneg %p130
      %p199 = pneg %p127
      %s200 = smul.u32 8, %s15
      %p201 = scmp.lt.s32.totalorder %s200, 15
      %s202 = scalar_select %p201, %s200, 15
      %s203 = smul.addr %s202, 8
      %s204 = scalar_lea.vmem %s4, %s203
      %s205 = smul.u32 8, %s15
      %p206 = scmp.lt.s32.totalorder %s205, 15
      %s207 = scalar_select %p206, %s205, 15
      %s208 = smul.addr %s207, 8
      %s209 = scalar_lea.vmem %s0, %s208
      %s210 = smul.u32 8, %s15
      %s211 = smul.u32 8, %s15
      %p212 = scmp.lt.s32.totalorder %s211, 15
      %s213 = scalar_select %p212, %s211, 15
      %s214 = smul.addr %s213, 8
      %s215 = scalar_lea.vmem %s3, %s214
      %s216 = smul.u32 8, %s15
      %s217 = smul.u32 8, %s15
      %p218 = scmp.lt.s32.totalorder %s217, 15
      %s219 = scalar_select %p218, %s217, 15
      %s220 = smul.addr %s219, 8
      %s221 = scalar_lea.vmem %s4, %s220
      %s222 = smul.u32 8, %s15
      %v223 = vld [vmem:[%s209] sm:$0xff]
      %v224 = vld [vmem:[%s209 + $0x8] sm:$0xff]
      %v225 = vld [vmem:[%s209 + $0x10] sm:$0xff]
      %v226 = vld [vmem:[%s209 + $0x18] sm:$0xff]
      %v227 = vld [vmem:[%s209 + $0x20] sm:$0xff]
      %v228 = vld [vmem:[%s209 + $0x28] sm:$0xff]
      %v229 = vld [vmem:[%s209 + $0x30] sm:$0xff]
      %v230 = vld [vmem:[%s209 + $0x38] sm:$0xff]
      %v231 = vld [vmem:[%s1] sm:$0xff]
      %v232 = vld [vmem:[%s1 + $0x8] sm:$0xff]
      %v233 = vld [vmem:[%s1 + $0x10] sm:$0xff]
      %v234 = vld [vmem:[%s1 + $0x18] sm:$0xff]
      %v235 = vld [vmem:[%s1 + $0x20] sm:$0xff]
      %v236 = vld [vmem:[%s1 + $0x28] sm:$0xff]
      %v237 = vld [vmem:[%s1 + $0x30] sm:$0xff]
      %v238 = vld [vmem:[%s1 + $0x38] sm:$0xff]
      %v239 = vld [vmem:[%s1 + $0x40] sm:$0xff]
      %v240 = vld [vmem:[%s2] sm:$0x1]
      %v242 = vlaneseq
      %v243 = vshrl.u32 %v242, 7
      %v244 = vsub.s32 0, %v243
      %v245 = vrot.slane %v240, %v244
      %vm247 = vcmask 588800
      %v249 = vsel %vm247, %v223, 0
      %v252 = vsel %vm247, %v224, 0
      %v255 = vsel %vm247, %v225, 0
      %v258 = vsel %vm247, %v226, 0
      %v261 = vsel %vm247, %v227, 0
      %v264 = vsel %vm247, %v228, 0
      %v267 = vsel %vm247, %v229, 0
      %v270 = vsel %vm247, %v230, 0
      %272 = vmatprep.subr.mxu0 0.0
      %273 = vmatpush1.msra.mxu0 0.0
      %274 = vmatprep.subr.mxu0 0.0
      %275 = vmatpush1.msra.mxu0 0.0
      %276 = vmatprep.subr.mxu0 0.0
      %277 = vmatpush1.msra.mxu0 0.0
      %278 = vmatprep.subr.mxu0 0.0
      %279 = vmatpush1.msra.mxu0 0.0
      %280 = vmatprep.subr.mxu0 0.0
      %281 = vmatpush1.msra.mxu0 0.0
      %282 = vmatprep.subr.mxu0 0.0
      %283 = vmatpush1.msra.mxu0 0.0
      %284 = vmatprep.subr.mxu0 0.0
      %285 = vmatpush1.msra.mxu0 0.0
      %286 = vmatprep.subr.mxu0 0.0
      %287 = vmatpush1.msra.mxu0 %v239
      %288 = vmatprep.subr.mxu0 0.0
      %289 = vmatpush1.msra.mxu0 %v238
      %290 = vmatprep.subr.mxu0 0.0
      %291 = vmatpush1.msra.mxu0 %v237
      %292 = vmatprep.subr.mxu0 0.0
      %293 = vmatpush1.msra.mxu0 %v236
      %294 = vmatprep.subr.mxu0 0.0
      %295 = vmatpush1.msra.mxu0 %v235
      %296 = vmatprep.subr.mxu0 0.0
      %297 = vmatpush1.msra.mxu0 %v234
      %298 = vmatprep.subr.mxu0 0.0
      %299 = vmatpush1.msra.mxu0 %v233
      %300 = vmatprep.subr.mxu0 0.0
      %301 = vmatpush1.msra.mxu0 %v232
      %302 = vmatprep.subr.mxu0 0.0
      %303 = vmatpush1.msra.mxu0 %v231
      %304 = vmatprep.subr.mxu0 0.0
      %305 = vmatpush2.msra.mxu0 0.0
      %306 = vmatprep.subr.mxu0 0.0
      %307 = vmatpush2.msra.mxu0 0.0
      %308 = vmatprep.subr.mxu0 0.0
      %309 = vmatpush2.msra.mxu0 0.0
      %310 = vmatprep.subr.mxu0 0.0
      %311 = vmatpush2.msra.mxu0 0.0
      %312 = vmatprep.subr.mxu0 0.0
      %313 = vmatpush2.msra.mxu0 0.0
      %314 = vmatprep.subr.mxu0 0.0
      %315 = vmatpush2.msra.mxu0 0.0
      %316 = vmatprep.subr.mxu0 0.0
      %317 = vmatpush2.msra.mxu0 0.0
      %318 = vmatprep.subr.mxu0 0.0
      %319 = vmatpush2.msra.mxu0 0.0
      %320 = vmatprep.subr.mxu0 0.0
      %321 = vmatpush2.msra.mxu0 0.0
      %322 = vmatprep.subr.mxu0 0.0
      %323 = vmatpush2.msra.mxu0 0.0
      %324 = vmatprep.subr.mxu0 0.0
      %325 = vmatpush2.msra.mxu0 0.0
      %326 = vmatprep.subr.mxu0 0.0
      %327 = vmatpush2.msra.mxu0 0.0
      %328 = vmatprep.subr.mxu0 0.0
      %329 = vmatpush2.msra.mxu0 0.0
      %330 = vmatprep.subr.mxu0 0.0
      %331 = vmatpush2.msra.mxu0 0.0
      %332 = vmatprep.subr.mxu0 0.0
      %333 = vmatpush2.msra.mxu0 0.0
      %334 = vmatprep.subr.mxu0 0.0
      %335 = vmatpush2.msra.mxu0 0.0
      %336 = vmatprep.mubr.f32.mxu0 0.0
      %337 = vmatmul.mubr.f32.gmra.mxu0 %v249
      %v338 = vpop.f32.mrf.mxu0
      %v339 = vadd.f32 %v245, %v338
      %v340 = vpop.f32.mrf.mxu0
      %341 = vmatprep.mubr.f32.mxu0 0.0
      %342 = vmatmul.mubr.f32.gmra.mxu0 %v252
      %v343 = vpop.f32.mrf.mxu0
      %v344 = vadd.f32 %v245, %v343
      %v345 = vpop.f32.mrf.mxu0
      %346 = vmatprep.mubr.f32.mxu0 0.0
      %347 = vmatmul.mubr.f32.gmra.mxu0 %v255
      %v348 = vpop.f32.mrf.mxu0
      %v349 = vadd.f32 %v245, %v348
      %v350 = vpop.f32.mrf.mxu0
      %351 = vmatprep.mubr.f32.mxu0 0.0
      %352 = vmatmul.mubr.f32.gmra.mxu0 %v258
      %v353 = vpop.f32.mrf.mxu0
      %v354 = vadd.f32 %v245, %v353
      %v355 = vpop.f32.mrf.mxu0
      %356 = vmatprep.mubr.f32.mxu0 0.0
      %357 = vmatmul.mubr.f32.gmra.mxu0 %v261
      %v358 = vpop.f32.mrf.mxu0
      %v359 = vadd.f32 %v245, %v358
      %v360 = vpop.f32.mrf.mxu0
      %361 = vmatprep.mubr.f32.mxu0 0.0
      %362 = vmatmul.mubr.f32.gmra.mxu0 %v264
      %v363 = vpop.f32.mrf.mxu0
      %v364 = vadd.f32 %v245, %v363
      %v365 = vpop.f32.mrf.mxu0
      %366 = vmatprep.mubr.f32.mxu0 0.0
      %367 = vmatmul.mubr.f32.gmra.mxu0 %v267
      %v368 = vpop.f32.mrf.mxu0
      %v369 = vadd.f32 %v245, %v368
      %v370 = vpop.f32.mrf.mxu0
      %371 = vmatprep.mubr.f32.mxu0 0.0
      %372 = vmatmul.mubr.f32.gmra.mxu0 %v270
      %v373 = vpop.f32.mrf.mxu0
      %v374 = vadd.f32 %v245, %v373
      %v375 = vpop.f32.mrf.mxu0
      %376 = vdwg.mxu0
      %v377 = vld [vmem:[%s215] sm:$0xff]
      %v378 = vld [vmem:[%s215 + $0x8] sm:$0xff]
      %v379 = vld [vmem:[%s215 + $0x10] sm:$0xff]
      %v380 = vld [vmem:[%s215 + $0x18] sm:$0xff]
      %v381 = vld [vmem:[%s215 + $0x20] sm:$0xff]
      %v382 = vld [vmem:[%s215 + $0x28] sm:$0xff]
      %v383 = vld [vmem:[%s215 + $0x30] sm:$0xff]
      %v384 = vld [vmem:[%s215 + $0x38] sm:$0xff]
      %v385 = vadd.f32 %v339, %v377
      %v386 = vadd.f32 %v344, %v378
      %v387 = vadd.f32 %v349, %v379
      %v388 = vadd.f32 %v354, %v380
      %v389 = vadd.f32 %v359, %v381
      %v390 = vadd.f32 %v364, %v382
      %v391 = vadd.f32 %v369, %v383
      %v392 = vadd.f32 %v374, %v384
      %v393 = vmax.f32 %v385, 0.0
      %v394 = vmax.f32 %v386, 0.0
      %v395 = vmax.f32 %v387, 0.0
      %v396 = vmax.f32 %v388, 0.0
      %v397 = vmax.f32 %v389, 0.0
      %v398 = vmax.f32 %v390, 0.0
      %v399 = vmax.f32 %v391, 0.0
      %v400 = vmax.f32 %v392, 0.0
      %401 = vst [vmem:[%s221] sm:$0xff] %v393
      %402 = vst [vmem:[%s221 + $0x8] sm:$0xff] %v394
      %403 = vst [vmem:[%s221 + $0x10] sm:$0xff] %v395
      %404 = vst [vmem:[%s221 + $0x18] sm:$0xff] %v396
      %405 = vst [vmem:[%s221 + $0x20] sm:$0xff] %v397
      %406 = vst [vmem:[%s221 + $0x28] sm:$0xff] %v398
      %407 = vst [vmem:[%s221 + $0x30] sm:$0xff] %v399
      %408 = vst [vmem:[%s221 + $0x38] sm:$0xff] %v400
      %s409 = smul.u32 8, %s15
      %p410 = scmp.lt.s32.totalorder %s409, 15
      %s411 = scalar_select %p410, %s409, 15
      %s412 = smul.addr %s411, 8
      %s413 = scalar_lea.vmem %s4, %s412
      // Predicated region
      $region37: #{basic_block_forward.3} parent=35 // pred_check
        %p414 = pneg %p127
      $region38: #{basic_block_forward.3} parent=35 // pred_check_branch
        %416 = sbr.rel (%p414) target = $region40
      $region39: #{basic_block_forward.3} parent=35 // pred_region
        %s417 = smul.u32 8, %s15
      $region40: #{basic_block_forward.3} parent=35 // pred_fallthru
        _
    $region36: #{basic_block_forward.3} parent=5 // pred_fallthru
      _
    %p418 = scmp.le.s32.totalorder 2, %s10
    // Predicated region
    $region41: #{basic_block_forward.3} parent=5 // pred_check
      %p419 = pneg %p418
    $region42: #{basic_block_forward.3} parent=5 // pred_check_branch
      %421 = sbr.rel (%p419) target = $region44
    $region43: #{basic_block_forward.3} parent=5 // pred_region
      %s422 = ssub.s32 %s10, 2
      // Predicated region
      $region45: #{basic_block_forward.3} parent=43 // pred_check
        %p423 = pneg %p133
      $region46: #{basic_block_forward.3} parent=43 // pred_check_branch
        %425 = sbr.rel (%p423) target = $region48
      $region47: #{basic_block_forward.3} parent=43 // pred_region
        %s426 = smul.u32 8, %s16
        %p427 = scmp.lt.s32.totalorder %s426, 15
        %s428 = scalar_select %p427, %s426, 15
        %s429 = smul.addr %s428, 8
        %s430 = scalar_lea.vmem %s4, %s429
      $region48: #{basic_block_forward.3} parent=43 // pred_fallthru
        _
    $region44: #{basic_block_forward.3} parent=5 // pred_fallthru
      _
  $region6: #{basic_block_forward.3} parent=0 // loop_footer
    %s14 = sadd.s32 1, %s10
  $region7: #{basic_block_forward.3} parent=0 // loop_footer_branch
    %9 = sbr.rel target = $region3
  $region8: #{basic_block_forward.3} parent=0 // loop_exit
    _

// kernel: basic_block_forward.2
$region0: #{basic_block_forward.2}
  #allocation0 [shape = 'u32[]', space=smem, size = 0x4, offset = 0x4, fixed_abs, tag = 'smem constant byte address 0x4 - core index']
  #allocation1 [shape = 'u32[144,128]{1,0:T(1,128)}', space=vmem, size = 0x12000, scoped, tag = 'internal scratch']
  %s0 = inlined_call_operand.vmem [shape: f32[128,36], index: 0, kind: input, shape index: {}]
  %s1 = inlined_call_operand.vmem [shape: f32[36,128], index: 1, kind: input, shape index: {}]
  %s2 = inlined_call_operand.vmem [shape: f32[1,128], index: 2, kind: input, shape index: {}]
  %s3 = inlined_call_operand.vmem [shape: f32[128,128], index: 3, kind: output, shape index: {}]
  %s4 = sld [smem:[#allocation0]]
  $region45: #{basic_block_forward.2} parent=0
    _
  %s6 = ssub.s32 1, %s4
  %s7 = scalar_select 0, %s6, %s4
  loop: start=0, step=1, limit=4
  $region2: #{basic_block_forward.2} parent=0 // loop_pre_header
    _
  $region3: #{basic_block_forward.2} parent=0 // loop_header
    %s9 = sphi 0, %s13
    %p10 = scmp.ge.s32.totalorder %s9, 4
    %s19 = sphi 0, %s21
    %s22 = sphi 0, %s19
    %s23 = sphi 0, %s22
    %s39 = sphi 0, %s23
    %s43 = sphi 0, %s43
    %s45 = sphi 0, %s43
    %s46 = sphi 0, %s45
    %s60 = sphi 0, %s46
    %s64 = sphi 0, %s64
    %s66 = sphi 0, %s64
    %s67 = sphi 0, %s66
    %s81 = sphi 0, %s67
    %s87 = sphi 0, %s89
    %s90 = sphi 0, %s87
    %s91 = sphi 0, %s90
    %s107 = sphi 0, %s91
  $region4: #{basic_block_forward.2} parent=0 // loop_header_branch
    %12 = sbr.rel (%p10) target = $region8
  $region5: #{basic_block_forward.2} parent=0 // loop_body
    %s14 = ssub.s32 %s9, 1
    %s15 = ssub.s32 %s9, 2
    %s16 = sadd.s32 %s9, 1
    %s17 = ssub.s32 %s9, %s16
    %p18 = scmp.eq.s32.totalorder %s17, 0
    %s20 = sadd.s32 %s19, 1
    %s21 = scalar_select %p18, %s19, %s20
    %p24 = pneg %p18
    %p25 = scmp.eq.s32.totalorder %s9, 1
    %p26 = por %p24, %p25
    %p27 = scmp.ne.s32.totalorder %s19, %s22
    %p28 = scmp.eq.s32.totalorder %s9, 0
    %p29 = por %p27, %p28
    %p30 = scmp.ne.s32.totalorder %s19, %s22
    %p31 = scmp.eq.s32.totalorder %s14, 1
    %p32 = por %p30, %p31
    %p33 = scmp.ne.s32.totalorder %s22, %s23
    %p34 = scmp.eq.s32.totalorder %s14, 0
    %p35 = por %p33, %p34
    %p36 = scmp.ne.s32.totalorder %s22, %s23
    %p37 = scmp.eq.s32.totalorder %s15, 1
    %p38 = por %p36, %p37
    %p40 = scmp.ne.s32.totalorder %s23, %s39
    %p41 = scmp.eq.s32.totalorder %s15, 0
    %p42 = por %p40, %p41
    %s44 = sadd.s32 %s43, 1
    %p47 = scmp.eq.s32.totalorder %s9, 1
    %p48 = scmp.ne.s32.totalorder %s43, %s45
    %p49 = scmp.eq.s32.totalorder %s9, 0
    %p50 = por %p48, %p49
    %p51 = scmp.ne.s32.totalorder %s43, %s45
    %p52 = scmp.eq.s32.totalorder %s14, 1
    %p53 = por %p51, %p52
    %p54 = scmp.ne.s32.totalorder %s45, %s46
    %p55 = scmp.eq.s32.totalorder %s14, 0
    %p56 = por %p54, %p55
    %p57 = scmp.ne.s32.totalorder %s45, %s46
    %p58 = scmp.eq.s32.totalorder %s15, 1
    %p59 = por %p57, %p58
    %p61 = scmp.ne.s32.totalorder %s46, %s60
    %p62 = scmp.eq.s32.totalorder %s15, 0
    %p63 = por %p61, %p62
    %s65 = sadd.s32 %s64, 1
    %p68 = scmp.eq.s32.totalorder %s9, 1
    %p69 = scmp.ne.s32.totalorder %s64, %s66
    %p70 = scmp.eq.s32.totalorder %s9, 0
    %p71 = por %p69, %p70
    %p72 = scmp.ne.s32.totalorder %s64, %s66
    %p73 = scmp.eq.s32.totalorder %s14, 1
    %p74 = por %p72, %p73
    %p75 = scmp.ne.s32.totalorder %s66, %s67
    %p76 = scmp.eq.s32.totalorder %s14, 0
    %p77 = por %p75, %p76
    %p78 = scmp.ne.s32.totalorder %s66, %s67
    %p79 = scmp.eq.s32.totalorder %s15, 1
    %p80 = por %p78, %p79
    %p82 = scmp.ne.s32.totalorder %s67, %s81
    %p83 = scmp.eq.s32.totalorder %s15, 0
    %p84 = por %p82, %p83
    %s85 = ssub.s32 %s9, %s16
    %p86 = scmp.eq.s32.totalorder %s85, 0
    %s88 = sadd.s32 %s87, 1
    %s89 = scalar_select %p86, %s87, %s88
    %p92 = pneg %p86
    %p93 = scmp.eq.s32.totalorder %s9, 1
    %p94 = por %p92, %p93
    %p95 = scmp.ne.s32.totalorder %s87, %s90
    %p96 = scmp.eq.s32.totalorder %s9, 0
    %p97 = por %p95, %p96
    %p98 = scmp.ne.s32.totalorder %s87, %s90
    %p99 = scmp.eq.s32.totalorder %s14, 1
    %p100 = por %p98, %p99
    %p101 = scmp.ne.s32.totalorder %s90, %s91
    %p102 = scmp.eq.s32.totalorder %s14, 0
    %p103 = por %p101, %p102
    %p104 = scmp.ne.s32.totalorder %s90, %s91
    %p105 = scmp.eq.s32.totalorder %s15, 1
    %p106 = por %p104, %p105
    %p108 = scmp.ne.s32.totalorder %s91, %s107
    %p109 = scmp.eq.s32.totalorder %s15, 0
    %p110 = por %p108, %p109
    %p111 = scmp.le.s32.totalorder 1, %s9
    %p112 = scmp.lt.s32.totalorder %s9, 3
    %p113 = pnand %p111, %p112
    %p114 = pneg %p113
    // Predicated region
    $region9: #{basic_block_forward.2} parent=5 // pred_check
      _
    $region10: #{basic_block_forward.2} parent=5 // pred_check_branch
      %116 = sbr.rel (%p113) target = $region12
    $region11: #{basic_block_forward.2} parent=5 // pred_region
      %s117 = ssub.s32 %s9, 1
      // Predicated region
      $region13: #{basic_block_forward.2} parent=11 // pred_check
        %p118 = pneg %p56
      $region14: #{basic_block_forward.2} parent=11 // pred_check_branch
        %120 = sbr.rel (%p118) target = $region16
      $region15: #{basic_block_forward.2} parent=11 // pred_region
        _
      $region16: #{basic_block_forward.2} parent=11 // pred_fallthru
        _
      // Predicated region
      $region17: #{basic_block_forward.2} parent=11 // pred_check
        %p121 = pneg %p77
      $region18: #{basic_block_forward.2} parent=11 // pred_check_branch
        %123 = sbr.rel (%p121) target = $region20
      $region19: #{basic_block_forward.2} parent=11 // pred_region
        _
      $region20: #{basic_block_forward.2} parent=11 // pred_fallthru
        _
    $region12: #{basic_block_forward.2} parent=5 // pred_fallthru
      _
    %p124 = scmp.lt.s32.totalorder %s9, 2
    // Predicated region
    $region21: #{basic_block_forward.2} parent=5 // pred_check
      %p125 = pneg %p124
    $region22: #{basic_block_forward.2} parent=5 // pred_check_branch
      %127 = sbr.rel (%p125) target = $region24
    $region23: #{basic_block_forward.2} parent=5 // pred_region
      // Predicated region
      $region25: #{basic_block_forward.2} parent=23 // pred_check
        %p128 = pneg %p29
      $region26: #{basic_block_forward.2} parent=23 // pred_check_branch
        %130 = sbr.rel (%p128) target = $region28
      $region27: #{basic_block_forward.2} parent=23 // pred_region
        %s131 = smul.u32 8, %s9
        %p132 = scmp.lt.s32.totalorder %s131, 15
        %s133 = scalar_select %p132, %s131, 15
        %s134 = smul.addr %s133, 8
        %s135 = scalar_lea.vmem %s0, %s134
        %s136 = smul.u32 8, %s9
      $region28: #{basic_block_forward.2} parent=23 // pred_fallthru
        _
    $region24: #{basic_block_forward.2} parent=5 // pred_fallthru
      _
    %p137 = scmp.le.s32.totalorder 1, %s9
    %p138 = scmp.lt.s32.totalorder %s9, 3
    %p139 = pnand %p137, %p138
    %p140 = pneg %p139
    // Predicated region
    $region29: #{basic_block_forward.2} parent=5 // pred_check
      _
    $region30: #{basic_block_forward.2} parent=5 // pred_check_branch
      %142 = sbr.rel (%p139) target = $region32
    $region31: #{basic_block_forward.2} parent=5 // pred_region
      %s143 = ssub.s32 %s9, 1
      %s144 = smul.u32 8, %s14
      %p145 = scmp.lt.s32.totalorder %s144, 15
      %s146 = scalar_select %p145, %s144, 15
      %s147 = smul.addr %s146, 8
      %s148 = scalar_lea.vmem %s0, %s147
      %p149 = pneg %p35
      %p150 = pneg %p32
      %p151 = pneg %p56
      %p152 = pneg %p53
      %p153 = pneg %p77
      %p154 = pneg %p74
      %p155 = pneg %p103
      %p156 = pneg %p100
      %s157 = smul.u32 8, %s14
      %p158 = scmp.lt.s32.totalorder %s157, 15
      %s159 = scalar_select %p158, %s157, 15
      %s160 = smul.addr %s159, 8
      %s161 = scalar_lea.vmem %s3, %s160
      %s162 = smul.u32 8, %s14
      %p163 = scmp.lt.s32.totalorder %s162, 15
      %s164 = scalar_select %p163, %s162, 15
      %s165 = smul.addr %s164, 8
      %s166 = scalar_lea.vmem %s0, %s165
      %s167 = smul.u32 8, %s14
      %s168 = smul.u32 8, %s14
      %p169 = scmp.lt.s32.totalorder %s168, 15
      %s170 = scalar_select %p169, %s168, 15
      %s171 = smul.addr %s170, 8
      %s172 = scalar_lea.vmem %s3, %s171
      %s173 = smul.u32 8, %s14
      %v174 = vld [vmem:[%s166] sm:$0xff]
      %v175 = vld [vmem:[%s166 + $0x8] sm:$0xff]
      %v176 = vld [vmem:[%s166 + $0x10] sm:$0xff]
      %v177 = vld [vmem:[%s166 + $0x18] sm:$0xff]
      %v178 = vld [vmem:[%s166 + $0x20] sm:$0xff]
      %v179 = vld [vmem:[%s166 + $0x28] sm:$0xff]
      %v180 = vld [vmem:[%s166 + $0x30] sm:$0xff]
      %v181 = vld [vmem:[%s166 + $0x38] sm:$0xff]
      %v182 = vld [vmem:[%s1] sm:$0xff]
      %v183 = vld [vmem:[%s1 + $0x8] sm:$0xff]
      %v184 = vld [vmem:[%s1 + $0x10] sm:$0xff]
      %v185 = vld [vmem:[%s1 + $0x18] sm:$0xff]
      %v186 = vld [vmem:[%s1 + $0x20] sm:$0xf]
      %v187 = vld [vmem:[%s2] sm:$0x1]
      %v189 = vlaneseq
      %v190 = vshrl.u32 %v189, 7
      %v191 = vsub.s32 0, %v190
      %v192 = vrot.slane %v187, %v191
      %vm194 = vcmask 293888
      %v196 = vsel %vm194, %v174, 0
      %v199 = vsel %vm194, %v175, 0
      %v202 = vsel %vm194, %v176, 0
      %v205 = vsel %vm194, %v177, 0
      %v208 = vsel %vm194, %v178, 0
      %v211 = vsel %vm194, %v179, 0
      %v214 = vsel %vm194, %v180, 0
      %v217 = vsel %vm194, %v181, 0
      %vm219 = vcmask 1043456
      %v221 = vsel %vm219, %v186, 0
      %223 = vmatprep.subr.mxu0 0.0
      %224 = vmatpush1.msra.mxu0 0.0
      %225 = vmatprep.subr.mxu0 0.0
      %226 = vmatpush1.msra.mxu0 0.0
      %227 = vmatprep.subr.mxu0 0.0
      %228 = vmatpush1.msra.mxu0 0.0
      %229 = vmatprep.subr.mxu0 0.0
      %230 = vmatpush1.msra.mxu0 0.0
      %231 = vmatprep.subr.mxu0 0.0
      %232 = vmatpush1.msra.mxu0 0.0
      %233 = vmatprep.subr.mxu0 0.0
      %234 = vmatpush1.msra.mxu0 0.0
      %235 = vmatprep.subr.mxu0 0.0
      %236 = vmatpush1.msra.mxu0 0.0
      %237 = vmatprep.subr.mxu0 0.0
      %238 = vmatpush1.msra.mxu0 0.0
      %239 = vmatprep.subr.mxu0 0.0
      %240 = vmatpush1.msra.mxu0 0.0
      %241 = vmatprep.subr.mxu0 0.0
      %242 = vmatpush1.msra.mxu0 0.0
      %243 = vmatprep.subr.mxu0 0.0
      %244 = vmatpush1.msra.mxu0 0.0
      %245 = vmatprep.subr.mxu0 0.0
      %246 = vmatpush1.msra.mxu0 %v221
      %247 = vmatprep.subr.mxu0 0.0
      %248 = vmatpush1.msra.mxu0 %v185
      %249 = vmatprep.subr.mxu0 0.0
      %250 = vmatpush1.msra.mxu0 %v184
      %251 = vmatprep.subr.mxu0 0.0
      %252 = vmatpush1.msra.mxu0 %v183
      %253 = vmatprep.subr.mxu0 0.0
      %254 = vmatpush1.msra.mxu0 %v182
      %255 = vmatprep.subr.mxu0 0.0
      %256 = vmatpush2.msra.mxu0 0.0
      %257 = vmatprep.subr.mxu0 0.0
      %258 = vmatpush2.msra.mxu0 0.0
      %259 = vmatprep.subr.mxu0 0.0
      %260 = vmatpush2.msra.mxu0 0.0
      %261 = vmatprep.subr.mxu0 0.0
      %262 = vmatpush2.msra.mxu0 0.0
      %263 = vmatprep.subr.mxu0 0.0
      %264 = vmatpush2.msra.mxu0 0.0
      %265 = vmatprep.subr.mxu0 0.0
      %266 = vmatpush2.msra.mxu0 0.0
      %267 = vmatprep.subr.mxu0 0.0
      %268 = vmatpush2.msra.mxu0 0.0
      %269 = vmatprep.subr.mxu0 0.0
      %270 = vmatpush2.msra.mxu0 0.0
      %271 = vmatprep.subr.mxu0 0.0
      %272 = vmatpush2.msra.mxu0 0.0
      %273 = vmatprep.subr.mxu0 0.0
      %274 = vmatpush2.msra.mxu0 0.0
      %275 = vmatprep.subr.mxu0 0.0
      %276 = vmatpush2.msra.mxu0 0.0
      %277 = vmatprep.subr.mxu0 0.0
      %278 = vmatpush2.msra.mxu0 0.0
      %279 = vmatprep.subr.mxu0 0.0
      %280 = vmatpush2.msra.mxu0 0.0
      %281 = vmatprep.subr.mxu0 0.0
      %282 = vmatpush2.msra.mxu0 0.0
      %283 = vmatprep.subr.mxu0 0.0
      %284 = vmatpush2.msra.mxu0 0.0
      %285 = vmatprep.subr.mxu0 0.0
      %286 = vmatpush2.msra.mxu0 0.0
      %287 = vmatprep.mubr.f32.mxu0 0.0
      %288 = vmatmul.mubr.f32.gmra.mxu0 %v196
      %v289 = vpop.f32.mrf.mxu0
      %v290 = vadd.f32 %v192, %v289
      %v291 = vpop.f32.mrf.mxu0
      %292 = vmatprep.mubr.f32.mxu0 0.0
      %293 = vmatmul.mubr.f32.gmra.mxu0 %v199
      %v294 = vpop.f32.mrf.mxu0
      %v295 = vadd.f32 %v192, %v294
      %v296 = vpop.f32.mrf.mxu0
      %297 = vmatprep.mubr.f32.mxu0 0.0
      %298 = vmatmul.mubr.f32.gmra.mxu0 %v202
      %v299 = vpop.f32.mrf.mxu0
      %v300 = vadd.f32 %v192, %v299
      %v301 = vpop.f32.mrf.mxu0
      %302 = vmatprep.mubr.f32.mxu0 0.0
      %303 = vmatmul.mubr.f32.gmra.mxu0 %v205
      %v304 = vpop.f32.mrf.mxu0
      %v305 = vadd.f32 %v192, %v304
      %v306 = vpop.f32.mrf.mxu0
      %307 = vmatprep.mubr.f32.mxu0 0.0
      %308 = vmatmul.mubr.f32.gmra.mxu0 %v208
      %v309 = vpop.f32.mrf.mxu0
      %v310 = vadd.f32 %v192, %v309
      %v311 = vpop.f32.mrf.mxu0
      %312 = vmatprep.mubr.f32.mxu0 0.0
      %313 = vmatmul.mubr.f32.gmra.mxu0 %v211
      %v314 = vpop.f32.mrf.mxu0
      %v315 = vadd.f32 %v192, %v314
      %v316 = vpop.f32.mrf.mxu0
      %317 = vmatprep.mubr.f32.mxu0 0.0
      %318 = vmatmul.mubr.f32.gmra.mxu0 %v214
      %v319 = vpop.f32.mrf.mxu0
      %v320 = vadd.f32 %v192, %v319
      %v321 = vpop.f32.mrf.mxu0
      %322 = vmatprep.mubr.f32.mxu0 0.0
      %323 = vmatmul.mubr.f32.gmra.mxu0 %v217
      %v324 = vpop.f32.mrf.mxu0
      %v325 = vadd.f32 %v192, %v324
      %v326 = vpop.f32.mrf.mxu0
      %327 = vdwg.mxu0
      %v328 = vmax.f32 %v290, 0.0
      %v329 = vmax.f32 %v295, 0.0
      %v330 = vmax.f32 %v300, 0.0
      %v331 = vmax.f32 %v305, 0.0
      %v332 = vmax.f32 %v310, 0.0
      %v333 = vmax.f32 %v315, 0.0
      %v334 = vmax.f32 %v320, 0.0
      %v335 = vmax.f32 %v325, 0.0
      %336 = vst [vmem:[%s172] sm:$0xff] %v328
      %337 = vst [vmem:[%s172 + $0x8] sm:$0xff] %v329
      %338 = vst [vmem:[%s172 + $0x10] sm:$0xff] %v330
      %339 = vst [vmem:[%s172 + $0x18] sm:$0xff] %v331
      %340 = vst [vmem:[%s172 + $0x20] sm:$0xff] %v332
      %341 = vst [vmem:[%s172 + $0x28] sm:$0xff] %v333
      %342 = vst [vmem:[%s172 + $0x30] sm:$0xff] %v334
      %343 = vst [vmem:[%s172 + $0x38] sm:$0xff] %v335
      %s344 = smul.u32 8, %s14
      %p345 = scmp.lt.s32.totalorder %s344, 15
      %s346 = scalar_select %p345, %s344, 15
      %s347 = smul.addr %s346, 8
      %s348 = scalar_lea.vmem %s3, %s347
      // Predicated region
      $region33: #{basic_block_forward.2} parent=31 // pred_check
        %p349 = pneg %p100
      $region34: #{basic_block_forward.2} parent=31 // pred_check_branch
        %351 = sbr.rel (%p349) target = $region36
      $region35: #{basic_block_forward.2} parent=31 // pred_region
        %s352 = smul.u32 8, %s14
      $region36: #{basic_block_forward.2} parent=31 // pred_fallthru
        _
    $region32: #{basic_block_forward.2} parent=5 // pred_fallthru
      _
    %p353 = scmp.le.s32.totalorder 2, %s9
    // Predicated region
    $region37: #{basic_block_forward.2} parent=5 // pred_check
      %p354 = pneg %p353
    $region38: #{basic_block_forward.2} parent=5 // pred_check_branch
      %356 = sbr.rel (%p354) target = $region40
    $region39: #{basic_block_forward.2} parent=5 // pred_region
      %s357 = ssub.s32 %s9, 2
      // Predicated region
      $region41: #{basic_block_forward.2} parent=39 // pred_check
        %p358 = pneg %p106
      $region42: #{basic_block_forward.2} parent=39 // pred_check_branch
        %360 = sbr.rel (%p358) target = $region44
      $region43: #{basic_block_forward.2} parent=39 // pred_region
        %s361 = smul.u32 8, %s15
        %p362 = scmp.lt.s32.totalorder %s361, 15
        %s363 = scalar_select %p362, %s361, 15
        %s364 = smul.addr %s363, 8
        %s365 = scalar_lea.vmem %s3, %s364
      $region44: #{basic_block_forward.2} parent=39 // pred_fallthru
        _
    $region40: #{basic_block_forward.2} parent=5 // pred_fallthru
      _
  $region6: #{basic_block_forward.2} parent=0 // loop_footer
    %s13 = sadd.s32 1, %s9
  $region7: #{basic_block_forward.2} parent=0 // loop_footer_branch
    %8 = sbr.rel target = $region3
  $region8: #{basic_block_forward.2} parent=0 // loop_exit
    _

</llo_original>
